<compile_context>
chip_gen: v5e
topology: v5e:2x2
jax: 0.10.0
libtpu: 0.0.40
codegen_flags: <defaults>
</compile_context>

<pallas_src>
import jax
import jax.numpy as jnp
from jax.experimental import pallas as pl
from jax.experimental.pallas import tpu as pltpu


# ----------------------------- Pallas kernel ------------------------------

def _fused_cnn_kernel(a0_ref, wf1_ref, b1_ref,
                      s2_ref, wf2_ref, b2_ref,
                      s3_ref, wf3_ref, b3_ref,
                      s4_ref, wf4_ref, b4_ref,
                      pmean_ref, fcw_ref, fcb_ref,
                      out_ref):
    """Whole SimpleCNN forward on VMEM-resident values (single grid step)."""

    def mm(a, b):
        return jnp.dot(a, b, preferred_element_type=jnp.float32)

    # Layer 1: 1x1 conv + ReLU == one GEMM on the (N*H, W*Cin) row layout.
    act = jnp.maximum(mm(a0_ref[...], wf1_ref[...]) + b1_ref[...], 0.0)

    # Layers 2-4: 3x3 stride-2 convs + ReLU as a sum over the 3 kernel rows.
    def conv_block(act, s_ref, wf_ref, b_ref):
        acc = None
        for di in range(s_ref.shape[0]):                 # static unroll (kh = 3)
            tap = mm(mm(s_ref[di], act), wf_ref[di])
            acc = tap if acc is None else acc + tap
        return jnp.maximum(acc + b_ref[...], 0.0)

    act = conv_block(act, s2_ref, wf2_ref, b2_ref)       # (N*7, 7*8)
    act = conv_block(act, s3_ref, wf3_ref, b3_ref)       # (N*3, 3*8)
    act = conv_block(act, s4_ref, wf4_ref, b4_ref)       # (N*1, 1*8)

    # Head: per-sample spatial mean + Linear(8, 1), folded into two matmuls.
    out_ref[...] = mm(mm(pmean_ref[...], act), fcw_ref[...]) + fcb_ref[...]


# --------------------------- weight packing (JAX) --------------------------

def _out_size(n, k, s):
    return (n - k) // s + 1


def _fold_conv_cols(w_hwio, w_in, stride):
    """Fold the horizontal im2col + stride into the conv weight.

    Returns (kh, w_in*Cin, w_out*Cout): for kernel row di, a dense matrix F with
    F[w*Cin + ci, ow*Cout + co] = w[di, w - stride*ow, ci, co] (0 outside the
    tap window), so that  row_out = row_in @ F  performs the conv along W.
    """
    kh, kw, cin, cout = w_hwio.shape
    w_out = _out_size(w_in, kw, stride)
    wi = jnp.arange(w_in)[:, None]
    ow = jnp.arange(w_out)[None, :]
    dj = wi - stride * ow                                    # (w_in, w_out)
    valid = (dj >= 0) & (dj < kw)
    g = w_hwio[:, jnp.clip(dj, 0, kw - 1), :, :]             # (kh, w_in, w_out, cin, cout)
    g = jnp.where(valid[None, :, :, None, None], g, 0.0)
    g = jnp.transpose(g, (0, 1, 3, 2, 4))                    # (kh, w_in, cin, w_out, cout)
    return g.reshape(kh, w_in * cin, w_out * cout)


def _row_select(h_in, stride, kh, batch):
    """(kh, batch*h_out, batch*h_in) 0/1 matrices: output row oh of kernel-row
    tap di selects input row stride*oh + di (block-diagonal over the batch)."""
    h_out = _out_size(h_in, kh, stride)
    oh = jnp.arange(h_out)[:, None]
    hh = jnp.arange(h_in)[None, :]
    eye_n = jnp.eye(batch, dtype=jnp.float32)
    taps = [jnp.kron(eye_n, (hh == stride * oh + di).astype(jnp.float32))
            for di in range(kh)]
    return jnp.stack(taps)


def pack_simple_cnn(params, batch, in_channels, spatial):
    """One-time packing of the PyTorch-equivalent weights into matmul form.

    Hoisted off the per-forward critical path: the jitted forward only does a
    layout reshape of x plus a single pallas_call over these constants.
    """
    n, cin = batch, in_channels
    h0 = w0 = spatial
    c1, c2, c3, c4 = 16, 8, 8, 8
    h1, w1 = h0, w0                                          # conv1: 1x1, stride 1
    h2, w2 = _out_size(h1, 3, 2), _out_size(w1, 3, 2)
    h3, w3 = _out_size(h2, 3, 2), _out_size(w2, 3, 2)
    h4, w4 = _out_size(h3, 3, 2), _out_size(w3, 3, 2)

    wf1 = jnp.kron(jnp.eye(w0, dtype=jnp.float32), params["w1"][0, 0])   # (w0*cin, w1*c1)
    b1 = jnp.tile(params["b1"], w1).reshape(1, w1 * c1)

    s2 = _row_select(h1, 2, 3, n)
    wf2 = _fold_conv_cols(params["w2"], w1, 2)
    b2 = jnp.tile(params["b2"], w2).reshape(1, w2 * c2)

    s3 = _row_select(h2, 2, 3, n)
    wf3 = _fold_conv_cols(params["w3"], w2, 2)
    b3 = jnp.tile(params["b3"], w3).reshape(1, w3 * c3)

    s4 = _row_select(h3, 2, 3, n)
    wf4 = _fold_conv_cols(params["w4"], w3, 2)
    b4 = jnp.tile(params["b4"], w4).reshape(1, w4 * c4)

    pmean = jnp.kron(jnp.eye(n, dtype=jnp.float32),
                     jnp.full((1, h4), 1.0 / (h4 * w4), jnp.float32))     # (n, n*h4)
    fcw = jnp.tile(params["fc_w"], (w4, 1))                               # (w4*c4, 1)
    fcb = params["fc_b"]                                                  # (1, 1)

    return {
        "wf1": wf1, "b1": b1,
        "s2": s2, "wf2": wf2, "b2": b2,
        "s3": s3, "wf3": wf3, "b3": b3,
        "s4": s4, "wf4": wf4, "b4": b4,
        "pmean": pmean, "fcw": fcw, "fcb": fcb,
    }


def _full_spec(shape):
    ndim = len(shape)
    return pl.BlockSpec(shape, lambda i, _n=ndim: (0,) * _n)


# ------------------------------ forward pass -------------------------------

@jax.jit
def simple_cnn_forward(x_nchw, packed):
    """Fused forward: NCHW input + pre-packed weights -> (N,) outputs."""
    # NCHW (PyTorch) -> NHWC, then rows=(N*H), cols=(W*C) for the row-GEMM form.
    x = jnp.transpose(x_nchw, (0, 2, 3, 1)).astype(jnp.float32)
    n, h0, w0, cin = x.shape
    a0 = x.reshape(n * h0, w0 * cin)

    operands = (a0,
                packed["wf1"], packed["b1"],
                packed["s2"], packed["wf2"], packed["b2"],
                packed["s3"], packed["wf3"], packed["b3"],
                packed["s4"], packed["wf4"], packed["b4"],
                packed["pmean"], packed["fcw"], packed["fcb"])

    # Advisory cost estimate for the XLA scheduler.
    flops = 2 * a0.shape[0] * packed["wf1"].shape[0] * packed["wf1"].shape[1]
    cols = packed["wf1"].shape[1]
    for s_name, w_name in (("s2", "wf2"), ("s3", "wf3"), ("s4", "wf4")):
        kh, rows_out, rows_in = packed[s_name].shape
        flops += kh * 2 * (rows_out * rows_in * cols
                           + rows_out * cols * packed[w_name].shape[2])
        cols = packed[w_name].shape[2]
    flops += 2 * (n * packed["pmean"].shape[1] * cols + n * cols)
    bytes_accessed = sum(int(o.size) * 4 for o in operands) + n * 4

    out = pl.pallas_call(
        _fused_cnn_kernel,
        out_shape=jax.ShapeDtypeStruct((n, 1), jnp.float32),
        grid=(1,),
        in_specs=[_full_spec(o.shape) for o in operands],
        out_specs=_full_spec((n, 1)),
        compiler_params=pltpu.CompilerParams(dimension_semantics=("arbitrary",)),
        cost_estimate=pl.CostEstimate(flops=int(flops), transcendentals=0,
                                      bytes_accessed=int(bytes_accessed)),
    )(*operands)

    # torch.squeeze + the 0-d guard in the reference == flatten to (N,).
    return out.reshape(-1)


# ------------------------------ test harness -------------------------------

def init_params(key, in_channels):
    """Deterministic synthetic weights (PyTorch-shape-consistent, HWIO layout)."""
    ks = jax.random.split(key, 10)

    def conv_w(k, kh, cin, cout):
        fan_in = kh * kh * cin
        return jax.random.normal(k, (kh, kh, cin, cout), jnp.float32) / jnp.sqrt(fan_in)

    return {
        "w1": conv_w(ks[0], 1, in_channels, 16),
        "b1": 0.01 * jax.random.normal(ks[1], (16,), jnp.float32),
        "w2": conv_w(ks[2], 3, 16, 8),
        "b2": 0.01 * jax.random.normal(ks[3], (8,), jnp.float32),
        "w3": conv_w(ks[4], 3, 8, 8),
        "b3": 0.01 * jax.random.normal(ks[5], (8,), jnp.float32),
        "w4": conv_w(ks[6], 3, 8, 8),
        "b4": 0.01 * jax.random.normal(ks[7], (8,), jnp.float32),
        "fc_w": jax.random.normal(ks[8], (8, 1), jnp.float32) / jnp.sqrt(8.0),
        "fc_b": 0.01 * jax.random.normal(ks[9], (1, 1), jnp.float32),
    }


@jax.jit
def _reference_forward(x_nchw, params):
    """Pure-JAX (XLA) reference of the PyTorch module, for a correctness check."""
    x = jnp.transpose(x_nchw, (0, 2, 3, 1)).astype(jnp.float32)

    def conv_relu(x, w, b, s):
        y = jax.lax.conv_general_dilated(
            x, w, window_strides=(s, s), padding="VALID",
            dimension_numbers=("NHWC", "HWIO", "NHWC"))
        return jnp.maximum(y + b, 0.0)

    x = conv_relu(x, params["w1"], params["b1"], 1)
    x = conv_relu(x, params["w2"], params["b2"], 2)
    x = conv_relu(x, params["w3"], params["b3"], 2)
    x = conv_relu(x, params["w4"], params["b4"], 2)
    feat = jnp.mean(x, axis=(1, 2))                       # (N, 8)
    return (feat @ params["fc_w"] + params["fc_b"]).reshape(-1)


if __name__ == "__main__":
    key = jax.random.PRNGKey(0)
    k_x, k_p = jax.random.split(key)

    batch, in_channels, spatial = 2, 4, 16
    x = jax.random.normal(k_x, (batch, in_channels, spatial, spatial), jnp.float32)
    params = init_params(k_p, in_channels)

    # One-time weight packing (off the per-forward critical path).
    packed = jax.tree_util.tree_map(jax.block_until_ready,
                                    pack_simple_cnn(params, batch, in_channels, spatial))

    out = jax.block_until_ready(simple_cnn_forward(x, packed))
    assert out.shape == (batch,), out.shape

    ref = jax.block_until_ready(_reference_forward(x, params))
    assert jnp.allclose(out, ref, rtol=1e-4, atol=1e-4), (out, ref)

    print("KERNEL_OK")
</pallas_src>

<mosaic_0001>
module attributes {stable_mosaic.version = 11 : i64} {
  func.func @_fused_cnn_kernel(%arg0: i32, %arg1: memref<32x64xf32, #tpu.memory_space<vmem>>, %arg2: memref<64x256xf32, #tpu.memory_space<vmem>>, %arg3: memref<1x256xf32, #tpu.memory_space<vmem>>, %arg4: memref<3x14x32xf32, #tpu.memory_space<vmem>>, %arg5: memref<3x256x56xf32, #tpu.memory_space<vmem>>, %arg6: memref<1x56xf32, #tpu.memory_space<vmem>>, %arg7: memref<3x6x14xf32, #tpu.memory_space<vmem>>, %arg8: memref<3x56x24xf32, #tpu.memory_space<vmem>>, %arg9: memref<1x24xf32, #tpu.memory_space<vmem>>, %arg10: memref<3x2x6xf32, #tpu.memory_space<vmem>>, %arg11: memref<3x24x8xf32, #tpu.memory_space<vmem>>, %arg12: memref<1x8xf32, #tpu.memory_space<vmem>>, %arg13: memref<2x2xf32, #tpu.memory_space<vmem>>, %arg14: memref<8x1xf32, #tpu.memory_space<vmem>>, %arg15: memref<1x1xf32, #tpu.memory_space<vmem>>, %arg16: memref<2x1xf32, #tpu.memory_space<vmem>>) attributes {dimension_semantics = [#tpu.dimension_semantics<arbitrary>], iteration_bounds = array<i64: 1>, scalar_prefetch = 0 : i64, scratch_operands = 0 : i64, tpu.core_type = #tpu.core_type<tc>, window_params = [{pipeline_mode = #tpu.pipeline_mode<synchronous>, transform_indices = @transform_0, window_bounds = array<i64: 32, 64>}, {pipeline_mode = #tpu.pipeline_mode<synchronous>, transform_indices = @transform_1, window_bounds = array<i64: 64, 256>}, {pipeline_mode = #tpu.pipeline_mode<synchronous>, transform_indices = @transform_2, window_bounds = array<i64: 1, 256>}, {pipeline_mode = #tpu.pipeline_mode<synchronous>, transform_indices = @transform_3, window_bounds = array<i64: 3, 14, 32>}, {pipeline_mode = #tpu.pipeline_mode<synchronous>, transform_indices = @transform_4, window_bounds = array<i64: 3, 256, 56>}, {pipeline_mode = #tpu.pipeline_mode<synchronous>, transform_indices = @transform_5, window_bounds = array<i64: 1, 56>}, {pipeline_mode = #tpu.pipeline_mode<synchronous>, transform_indices = @transform_6, window_bounds = array<i64: 3, 6, 14>}, {pipeline_mode = #tpu.pipeline_mode<synchronous>, transform_indices = @transform_7, window_bounds = array<i64: 3, 56, 24>}, {pipeline_mode = #tpu.pipeline_mode<synchronous>, transform_indices = @transform_8, window_bounds = array<i64: 1, 24>}, {pipeline_mode = #tpu.pipeline_mode<synchronous>, transform_indices = @transform_9, window_bounds = array<i64: 3, 2, 6>}, {pipeline_mode = #tpu.pipeline_mode<synchronous>, transform_indices = @transform_10, window_bounds = array<i64: 3, 24, 8>}, {pipeline_mode = #tpu.pipeline_mode<synchronous>, transform_indices = @transform_11, window_bounds = array<i64: 1, 8>}, {pipeline_mode = #tpu.pipeline_mode<synchronous>, transform_indices = @transform_12, window_bounds = array<i64: 2, 2>}, {pipeline_mode = #tpu.pipeline_mode<synchronous>, transform_indices = @transform_13, window_bounds = array<i64: 8, 1>}, {pipeline_mode = #tpu.pipeline_mode<synchronous>, transform_indices = @transform_14, window_bounds = array<i64: 1, 1>}, {pipeline_mode = #tpu.pipeline_mode<synchronous>, transform_indices = @transform_15, window_bounds = array<i64: 2, 1>}]} {
    %c0 = arith.constant 0 : index
    %c0_0 = arith.constant 0 : index
    %0 = vector.load %arg1[%c0, %c0_0] : memref<32x64xf32, #tpu.memory_space<vmem>>, vector<32x64xf32>
    %c0_1 = arith.constant 0 : index
    %c0_2 = arith.constant 0 : index
    %1 = vector.load %arg2[%c0_1, %c0_2] : memref<64x256xf32, #tpu.memory_space<vmem>>, vector<64x256xf32>
    %cst = arith.constant dense<0.000000e+00> : vector<32x256xf32>
    %2 = tpu.matmul %0, %1, %cst {dimension_numbers = #tpu.dot_dimension_numbers<[1], [0], [0], [1], [0, 0, 1, 1], [], []>} : vector<32x64xf32>, vector<64x256xf32>, vector<32x256xf32> -> vector<32x256xf32>
    %c0_3 = arith.constant 0 : index
    %c0_4 = arith.constant 0 : index
    %3 = vector.load %arg3[%c0_3, %c0_4] : memref<1x256xf32, #tpu.memory_space<vmem>>, vector<1x256xf32>
    %4 = vector.broadcast %3 : vector<1x256xf32> to vector<32x256xf32>
    %5 = arith.addf %2, %4 : vector<32x256xf32>
    %cst_5 = arith.constant 0.000000e+00 : f32
    %6 = vector.broadcast %cst_5 : f32 to vector<32x256xf32>
    %7 = arith.maximumf %5, %6 : vector<32x256xf32>
    %c0_6 = arith.constant 0 : index
    %c0_7 = arith.constant 0 : index
    %c0_8 = arith.constant 0 : index
    %8 = vector.load %arg4[%c0_6, %c0_7, %c0_8] : memref<3x14x32xf32, #tpu.memory_space<vmem>>, vector<1x14x32xf32>
    %9 = vector.shape_cast %8 : vector<1x14x32xf32> to vector<14x32xf32>
    %cst_9 = arith.constant dense<0.000000e+00> : vector<14x256xf32>
    %10 = tpu.matmul %9, %7, %cst_9 {dimension_numbers = #tpu.dot_dimension_numbers<[1], [0], [0], [1], [0, 0, 1, 1], [], []>} : vector<14x32xf32>, vector<32x256xf32>, vector<14x256xf32> -> vector<14x256xf32>
    %c0_10 = arith.constant 0 : index
    %c0_11 = arith.constant 0 : index
    %c0_12 = arith.constant 0 : index
    %11 = vector.load %arg5[%c0_10, %c0_11, %c0_12] : memref<3x256x56xf32, #tpu.memory_space<vmem>>, vector<1x256x56xf32>
    %12 = vector.shape_cast %11 : vector<1x256x56xf32> to vector<256x56xf32>
    %cst_13 = arith.constant dense<0.000000e+00> : vector<14x56xf32>
    %13 = tpu.matmul %10, %12, %cst_13 {dimension_numbers = #tpu.dot_dimension_numbers<[1], [0], [0], [1], [0, 0, 1, 1], [], []>} : vector<14x256xf32>, vector<256x56xf32>, vector<14x56xf32> -> vector<14x56xf32>
    %c1 = arith.constant 1 : index
    %c0_14 = arith.constant 0 : index
    %c0_15 = arith.constant 0 : index
    %14 = vector.load %arg4[%c1, %c0_14, %c0_15] : memref<3x14x32xf32, #tpu.memory_space<vmem>>, vector<1x14x32xf32>
    %15 = vector.shape_cast %14 : vector<1x14x32xf32> to vector<14x32xf32>
    %cst_16 = arith.constant dense<0.000000e+00> : vector<14x256xf32>
    %16 = tpu.matmul %15, %7, %cst_16 {dimension_numbers = #tpu.dot_dimension_numbers<[1], [0], [0], [1], [0, 0, 1, 1], [], []>} : vector<14x32xf32>, vector<32x256xf32>, vector<14x256xf32> -> vector<14x256xf32>
    %c1_17 = arith.constant 1 : index
    %c0_18 = arith.constant 0 : index
    %c0_19 = arith.constant 0 : index
    %17 = vector.load %arg5[%c1_17, %c0_18, %c0_19] : memref<3x256x56xf32, #tpu.memory_space<vmem>>, vector<1x256x56xf32>
    %18 = vector.shape_cast %17 : vector<1x256x56xf32> to vector<256x56xf32>
    %cst_20 = arith.constant dense<0.000000e+00> : vector<14x56xf32>
    %19 = tpu.matmul %16, %18, %cst_20 {dimension_numbers = #tpu.dot_dimension_numbers<[1], [0], [0], [1], [0, 0, 1, 1], [], []>} : vector<14x256xf32>, vector<256x56xf32>, vector<14x56xf32> -> vector<14x56xf32>
    %20 = arith.addf %13, %19 : vector<14x56xf32>
    %c2 = arith.constant 2 : index
    %c0_21 = arith.constant 0 : index
    %c0_22 = arith.constant 0 : index
    %21 = vector.load %arg4[%c2, %c0_21, %c0_22] : memref<3x14x32xf32, #tpu.memory_space<vmem>>, vector<1x14x32xf32>
    %22 = vector.shape_cast %21 : vector<1x14x32xf32> to vector<14x32xf32>
    %cst_23 = arith.constant dense<0.000000e+00> : vector<14x256xf32>
    %23 = tpu.matmul %22, %7, %cst_23 {dimension_numbers = #tpu.dot_dimension_numbers<[1], [0], [0], [1], [0, 0, 1, 1], [], []>} : vector<14x32xf32>, vector<32x256xf32>, vector<14x256xf32> -> vector<14x256xf32>
    %c2_24 = arith.constant 2 : index
    %c0_25 = arith.constant 0 : index
    %c0_26 = arith.constant 0 : index
    %24 = vector.load %arg5[%c2_24, %c0_25, %c0_26] : memref<3x256x56xf32, #tpu.memory_space<vmem>>, vector<1x256x56xf32>
    %25 = vector.shape_cast %24 : vector<1x256x56xf32> to vector<256x56xf32>
    %cst_27 = arith.constant dense<0.000000e+00> : vector<14x56xf32>
    %26 = tpu.matmul %23, %25, %cst_27 {dimension_numbers = #tpu.dot_dimension_numbers<[1], [0], [0], [1], [0, 0, 1, 1], [], []>} : vector<14x256xf32>, vector<256x56xf32>, vector<14x56xf32> -> vector<14x56xf32>
    %27 = arith.addf %20, %26 : vector<14x56xf32>
    %c0_28 = arith.constant 0 : index
    %c0_29 = arith.constant 0 : index
    %28 = vector.load %arg6[%c0_28, %c0_29] : memref<1x56xf32, #tpu.memory_space<vmem>>, vector<1x56xf32>
    %29 = vector.broadcast %28 : vector<1x56xf32> to vector<14x56xf32>
    %30 = arith.addf %27, %29 : vector<14x56xf32>
    %cst_30 = arith.constant 0.000000e+00 : f32
    %31 = vector.broadcast %cst_30 : f32 to vector<14x56xf32>
    %32 = arith.maximumf %30, %31 : vector<14x56xf32>
    %c0_31 = arith.constant 0 : index
    %c0_32 = arith.constant 0 : index
    %c0_33 = arith.constant 0 : index
    %33 = vector.load %arg7[%c0_31, %c0_32, %c0_33] : memref<3x6x14xf32, #tpu.memory_space<vmem>>, vector<1x6x14xf32>
    %34 = vector.shape_cast %33 : vector<1x6x14xf32> to vector<6x14xf32>
    %cst_34 = arith.constant dense<0.000000e+00> : vector<6x56xf32>
    %35 = tpu.matmul %34, %32, %cst_34 {dimension_numbers = #tpu.dot_dimension_numbers<[1], [0], [0], [1], [0, 0, 1, 1], [], []>} : vector<6x14xf32>, vector<14x56xf32>, vector<6x56xf32> -> vector<6x56xf32>
    %c0_35 = arith.constant 0 : index
    %c0_36 = arith.constant 0 : index
    %c0_37 = arith.constant 0 : index
    %36 = vector.load %arg8[%c0_35, %c0_36, %c0_37] : memref<3x56x24xf32, #tpu.memory_space<vmem>>, vector<1x56x24xf32>
    %37 = vector.shape_cast %36 : vector<1x56x24xf32> to vector<56x24xf32>
    %cst_38 = arith.constant dense<0.000000e+00> : vector<6x24xf32>
    %38 = tpu.matmul %35, %37, %cst_38 {dimension_numbers = #tpu.dot_dimension_numbers<[1], [0], [0], [1], [0, 0, 1, 1], [], []>} : vector<6x56xf32>, vector<56x24xf32>, vector<6x24xf32> -> vector<6x24xf32>
    %c1_39 = arith.constant 1 : index
    %c0_40 = arith.constant 0 : index
    %c0_41 = arith.constant 0 : index
    %39 = vector.load %arg7[%c1_39, %c0_40, %c0_41] : memref<3x6x14xf32, #tpu.memory_space<vmem>>, vector<1x6x14xf32>
    %40 = vector.shape_cast %39 : vector<1x6x14xf32> to vector<6x14xf32>
    %cst_42 = arith.constant dense<0.000000e+00> : vector<6x56xf32>
    %41 = tpu.matmul %40, %32, %cst_42 {dimension_numbers = #tpu.dot_dimension_numbers<[1], [0], [0], [1], [0, 0, 1, 1], [], []>} : vector<6x14xf32>, vector<14x56xf32>, vector<6x56xf32> -> vector<6x56xf32>
    %c1_43 = arith.constant 1 : index
    %c0_44 = arith.constant 0 : index
    %c0_45 = arith.constant 0 : index
    %42 = vector.load %arg8[%c1_43, %c0_44, %c0_45] : memref<3x56x24xf32, #tpu.memory_space<vmem>>, vector<1x56x24xf32>
    %43 = vector.shape_cast %42 : vector<1x56x24xf32> to vector<56x24xf32>
    %cst_46 = arith.constant dense<0.000000e+00> : vector<6x24xf32>
    %44 = tpu.matmul %41, %43, %cst_46 {dimension_numbers = #tpu.dot_dimension_numbers<[1], [0], [0], [1], [0, 0, 1, 1], [], []>} : vector<6x56xf32>, vector<56x24xf32>, vector<6x24xf32> -> vector<6x24xf32>
    %45 = arith.addf %38, %44 : vector<6x24xf32>
    %c2_47 = arith.constant 2 : index
    %c0_48 = arith.constant 0 : index
    %c0_49 = arith.constant 0 : index
    %46 = vector.load %arg7[%c2_47, %c0_48, %c0_49] : memref<3x6x14xf32, #tpu.memory_space<vmem>>, vector<1x6x14xf32>
    %47 = vector.shape_cast %46 : vector<1x6x14xf32> to vector<6x14xf32>
    %cst_50 = arith.constant dense<0.000000e+00> : vector<6x56xf32>
    %48 = tpu.matmul %47, %32, %cst_50 {dimension_numbers = #tpu.dot_dimension_numbers<[1], [0], [0], [1], [0, 0, 1, 1], [], []>} : vector<6x14xf32>, vector<14x56xf32>, vector<6x56xf32> -> vector<6x56xf32>
    %c2_51 = arith.constant 2 : index
    %c0_52 = arith.constant 0 : index
    %c0_53 = arith.constant 0 : index
    %49 = vector.load %arg8[%c2_51, %c0_52, %c0_53] : memref<3x56x24xf32, #tpu.memory_space<vmem>>, vector<1x56x24xf32>
    %50 = vector.shape_cast %49 : vector<1x56x24xf32> to vector<56x24xf32>
    %cst_54 = arith.constant dense<0.000000e+00> : vector<6x24xf32>
    %51 = tpu.matmul %48, %50, %cst_54 {dimension_numbers = #tpu.dot_dimension_numbers<[1], [0], [0], [1], [0, 0, 1, 1], [], []>} : vector<6x56xf32>, vector<56x24xf32>, vector<6x24xf32> -> vector<6x24xf32>
    %52 = arith.addf %45, %51 : vector<6x24xf32>
    %c0_55 = arith.constant 0 : index
    %c0_56 = arith.constant 0 : index
    %53 = vector.load %arg9[%c0_55, %c0_56] : memref<1x24xf32, #tpu.memory_space<vmem>>, vector<1x24xf32>
    %54 = vector.broadcast %53 : vector<1x24xf32> to vector<6x24xf32>
    %55 = arith.addf %52, %54 : vector<6x24xf32>
    %cst_57 = arith.constant 0.000000e+00 : f32
    %56 = vector.broadcast %cst_57 : f32 to vector<6x24xf32>
    %57 = arith.maximumf %55, %56 : vector<6x24xf32>
    %c0_58 = arith.constant 0 : index
    %c0_59 = arith.constant 0 : index
    %c0_60 = arith.constant 0 : index
    %58 = vector.load %arg10[%c0_58, %c0_59, %c0_60] : memref<3x2x6xf32, #tpu.memory_space<vmem>>, vector<1x2x6xf32>
    %59 = vector.shape_cast %58 : vector<1x2x6xf32> to vector<2x6xf32>
    %cst_61 = arith.constant dense<0.000000e+00> : vector<2x24xf32>
    %60 = tpu.matmul %59, %57, %cst_61 {dimension_numbers = #tpu.dot_dimension_numbers<[1], [0], [0], [1], [0, 0, 1, 1], [], []>} : vector<2x6xf32>, vector<6x24xf32>, vector<2x24xf32> -> vector<2x24xf32>
    %c0_62 = arith.constant 0 : index
    %c0_63 = arith.constant 0 : index
    %c0_64 = arith.constant 0 : index
    %61 = vector.load %arg11[%c0_62, %c0_63, %c0_64] : memref<3x24x8xf32, #tpu.memory_space<vmem>>, vector<1x24x8xf32>
    %62 = vector.shape_cast %61 : vector<1x24x8xf32> to vector<24x8xf32>
    %cst_65 = arith.constant dense<0.000000e+00> : vector<2x8xf32>
    %63 = tpu.matmul %60, %62, %cst_65 {dimension_numbers = #tpu.dot_dimension_numbers<[1], [0], [0], [1], [0, 0, 1, 1], [], []>} : vector<2x24xf32>, vector<24x8xf32>, vector<2x8xf32> -> vector<2x8xf32>
    %c1_66 = arith.constant 1 : index
    %c0_67 = arith.constant 0 : index
    %c0_68 = arith.constant 0 : index
    %64 = vector.load %arg10[%c1_66, %c0_67, %c0_68] : memref<3x2x6xf32, #tpu.memory_space<vmem>>, vector<1x2x6xf32>
    %65 = vector.shape_cast %64 : vector<1x2x6xf32> to vector<2x6xf32>
    %cst_69 = arith.constant dense<0.000000e+00> : vector<2x24xf32>
    %66 = tpu.matmul %65, %57, %cst_69 {dimension_numbers = #tpu.dot_dimension_numbers<[1], [0], [0], [1], [0, 0, 1, 1], [], []>} : vector<2x6xf32>, vector<6x24xf32>, vector<2x24xf32> -> vector<2x24xf32>
    %c1_70 = arith.constant 1 : index
    %c0_71 = arith.constant 0 : index
    %c0_72 = arith.constant 0 : index
    %67 = vector.load %arg11[%c1_70, %c0_71, %c0_72] : memref<3x24x8xf32, #tpu.memory_space<vmem>>, vector<1x24x8xf32>
    %68 = vector.shape_cast %67 : vector<1x24x8xf32> to vector<24x8xf32>
    %cst_73 = arith.constant dense<0.000000e+00> : vector<2x8xf32>
    %69 = tpu.matmul %66, %68, %cst_73 {dimension_numbers = #tpu.dot_dimension_numbers<[1], [0], [0], [1], [0, 0, 1, 1], [], []>} : vector<2x24xf32>, vector<24x8xf32>, vector<2x8xf32> -> vector<2x8xf32>
    %70 = arith.addf %63, %69 : vector<2x8xf32>
    %c2_74 = arith.constant 2 : index
    %c0_75 = arith.constant 0 : index
    %c0_76 = arith.constant 0 : index
    %71 = vector.load %arg10[%c2_74, %c0_75, %c0_76] : memref<3x2x6xf32, #tpu.memory_space<vmem>>, vector<1x2x6xf32>
    %72 = vector.shape_cast %71 : vector<1x2x6xf32> to vector<2x6xf32>
    %cst_77 = arith.constant dense<0.000000e+00> : vector<2x24xf32>
    %73 = tpu.matmul %72, %57, %cst_77 {dimension_numbers = #tpu.dot_dimension_numbers<[1], [0], [0], [1], [0, 0, 1, 1], [], []>} : vector<2x6xf32>, vector<6x24xf32>, vector<2x24xf32> -> vector<2x24xf32>
    %c2_78 = arith.constant 2 : index
    %c0_79 = arith.constant 0 : index
    %c0_80 = arith.constant 0 : index
    %74 = vector.load %arg11[%c2_78, %c0_79, %c0_80] : memref<3x24x8xf32, #tpu.memory_space<vmem>>, vector<1x24x8xf32>
    %75 = vector.shape_cast %74 : vector<1x24x8xf32> to vector<24x8xf32>
    %cst_81 = arith.constant dense<0.000000e+00> : vector<2x8xf32>
    %76 = tpu.matmul %73, %75, %cst_81 {dimension_numbers = #tpu.dot_dimension_numbers<[1], [0], [0], [1], [0, 0, 1, 1], [], []>} : vector<2x24xf32>, vector<24x8xf32>, vector<2x8xf32> -> vector<2x8xf32>
    %77 = arith.addf %70, %76 : vector<2x8xf32>
    %c0_82 = arith.constant 0 : index
    %c0_83 = arith.constant 0 : index
    %78 = vector.load %arg12[%c0_82, %c0_83] : memref<1x8xf32, #tpu.memory_space<vmem>>, vector<1x8xf32>
    %79 = vector.broadcast %78 : vector<1x8xf32> to vector<2x8xf32>
    %80 = arith.addf %77, %79 : vector<2x8xf32>
    %cst_84 = arith.constant 0.000000e+00 : f32
    %81 = vector.broadcast %cst_84 : f32 to vector<2x8xf32>
    %82 = arith.maximumf %80, %81 : vector<2x8xf32>
    %c0_85 = arith.constant 0 : index
    %c0_86 = arith.constant 0 : index
    %83 = vector.load %arg13[%c0_85, %c0_86] : memref<2x2xf32, #tpu.memory_space<vmem>>, vector<2x2xf32>
    %cst_87 = arith.constant dense<0.000000e+00> : vector<2x8xf32>
    %84 = tpu.matmul %83, %82, %cst_87 {dimension_numbers = #tpu.dot_dimension_numbers<[1], [0], [0], [1], [0, 0, 1, 1], [], []>} : vector<2x2xf32>, vector<2x8xf32>, vector<2x8xf32> -> vector<2x8xf32>
    %c0_88 = arith.constant 0 : index
    %c0_89 = arith.constant 0 : index
    %85 = vector.load %arg14[%c0_88, %c0_89] : memref<8x1xf32, #tpu.memory_space<vmem>>, vector<8x1xf32>
    %cst_90 = arith.constant dense<0.000000e+00> : vector<2x1xf32>
    %86 = tpu.matmul %84, %85, %cst_90 {dimension_numbers = #tpu.dot_dimension_numbers<[1], [0], [0], [1], [0, 0, 1, 1], [], []>} : vector<2x8xf32>, vector<8x1xf32>, vector<2x1xf32> -> vector<2x1xf32>
    %c0_91 = arith.constant 0 : index
    %c0_92 = arith.constant 0 : index
    %87 = vector.load %arg15[%c0_91, %c0_92] : memref<1x1xf32, #tpu.memory_space<vmem>>, vector<1x1xf32>
    %88 = vector.broadcast %87 : vector<1x1xf32> to vector<2x1xf32>
    %89 = arith.addf %86, %88 : vector<2x1xf32>
    %c0_93 = arith.constant 0 : index
    %c0_94 = arith.constant 0 : index
    %90 = vector.load %arg16[%c0_93, %c0_94] : memref<2x1xf32, #tpu.memory_space<vmem>>, vector<2x1xf32>
    tpu.vector_store %arg16[%c0_93, %c0_94], %89 {strides = array<i32>} : memref<2x1xf32, #tpu.memory_space<vmem>>, vector<2x1xf32>,
    return
  }
  func.func @transform_0(%arg0: i32) -> (i32, i32) {
    %c0_i32 = arith.constant 0 : i32
    %c0_i32_0 = arith.constant 0 : i32
    %c0_i32_1 = arith.constant 0 : i32
    return %c0_i32, %c0_i32_0 : i32, i32
  }
  func.func @transform_1(%arg0: i32) -> (i32, i32) {
    %c0_i32 = arith.constant 0 : i32
    %c0_i32_0 = arith.constant 0 : i32
    %c0_i32_1 = arith.constant 0 : i32
    return %c0_i32, %c0_i32_0 : i32, i32
  }
  func.func @transform_2(%arg0: i32) -> (i32, i32) {
    %c0_i32 = arith.constant 0 : i32
    %c0_i32_0 = arith.constant 0 : i32
    %c0_i32_1 = arith.constant 0 : i32
    return %c0_i32, %c0_i32_0 : i32, i32
  }
  func.func @transform_3(%arg0: i32) -> (i32, i32, i32) {
    %c0_i32 = arith.constant 0 : i32
    %c0_i32_0 = arith.constant 0 : i32
    %c0_i32_1 = arith.constant 0 : i32
    %c0_i32_2 = arith.constant 0 : i32
    return %c0_i32, %c0_i32_0, %c0_i32_1 : i32, i32, i32
  }
  func.func @transform_4(%arg0: i32) -> (i32, i32, i32) {
    %c0_i32 = arith.constant 0 : i32
    %c0_i32_0 = arith.constant 0 : i32
    %c0_i32_1 = arith.constant 0 : i32
    %c0_i32_2 = arith.constant 0 : i32
    return %c0_i32, %c0_i32_0, %c0_i32_1 : i32, i32, i32
  }
  func.func @transform_5(%arg0: i32) -> (i32, i32) {
    %c0_i32 = arith.constant 0 : i32
    %c0_i32_0 = arith.constant 0 : i32
    %c0_i32_1 = arith.constant 0 : i32
    return %c0_i32, %c0_i32_0 : i32, i32
  }
  func.func @transform_6(%arg0: i32) -> (i32, i32, i32) {
    %c0_i32 = arith.constant 0 : i32
    %c0_i32_0 = arith.constant 0 : i32
    %c0_i32_1 = arith.constant 0 : i32
    %c0_i32_2 = arith.constant 0 : i32
    return %c0_i32, %c0_i32_0, %c0_i32_1 : i32, i32, i32
  }
  func.func @transform_7(%arg0: i32) -> (i32, i32, i32) {
    %c0_i32 = arith.constant 0 : i32
    %c0_i32_0 = arith.constant 0 : i32
    %c0_i32_1 = arith.constant 0 : i32
    %c0_i32_2 = arith.constant 0 : i32
    return %c0_i32, %c0_i32_0, %c0_i32_1 : i32, i32, i32
  }
  func.func @transform_8(%arg0: i32) -> (i32, i32) {
    %c0_i32 = arith.constant 0 : i32
    %c0_i32_0 = arith.constant 0 : i32
    %c0_i32_1 = arith.constant 0 : i32
    return %c0_i32, %c0_i32_0 : i32, i32
  }
  func.func @transform_9(%arg0: i32) -> (i32, i32, i32) {
    %c0_i32 = arith.constant 0 : i32
    %c0_i32_0 = arith.constant 0 : i32
    %c0_i32_1 = arith.constant 0 : i32
    %c0_i32_2 = arith.constant 0 : i32
    return %c0_i32, %c0_i32_0, %c0_i32_1 : i32, i32, i32
  }
  func.func @transform_10(%arg0: i32) -> (i32, i32, i32) {
    %c0_i32 = arith.constant 0 : i32
    %c0_i32_0 = arith.constant 0 : i32
    %c0_i32_1 = arith.constant 0 : i32
    %c0_i32_2 = arith.constant 0 : i32
    return %c0_i32, %c0_i32_0, %c0_i32_1 : i32, i32, i32
  }
  func.func @transform_11(%arg0: i32) -> (i32, i32) {
    %c0_i32 = arith.constant 0 : i32
    %c0_i32_0 = arith.constant 0 : i32
    %c0_i32_1 = arith.constant 0 : i32
    return %c0_i32, %c0_i32_0 : i32, i32
  }
  func.func @transform_12(%arg0: i32) -> (i32, i32) {
    %c0_i32 = arith.constant 0 : i32
    %c0_i32_0 = arith.constant 0 : i32
    %c0_i32_1 = arith.constant 0 : i32
    return %c0_i32, %c0_i32_0 : i32, i32
  }
  func.func @transform_13(%arg0: i32) -> (i32, i32) {
    %c0_i32 = arith.constant 0 : i32
    %c0_i32_0 = arith.constant 0 : i32
    %c0_i32_1 = arith.constant 0 : i32
    return %c0_i32, %c0_i32_0 : i32, i32
  }
  func.func @transform_14(%arg0: i32) -> (i32, i32) {
    %c0_i32 = arith.constant 0 : i32
    %c0_i32_0 = arith.constant 0 : i32
    %c0_i32_1 = arith.constant 0 : i32
    return %c0_i32, %c0_i32_0 : i32, i32
  }
  func.func @transform_15(%arg0: i32) -> (i32, i32) {
    %c0_i32 = arith.constant 0 : i32
    %c0_i32_0 = arith.constant 0 : i32
    %c0_i32_1 = arith.constant 0 : i32
    return %c0_i32, %c0_i32_0 : i32, i32
  }
}

</mosaic_0001>

<llo_original>
// kernel: simple_cnn_forward.1
$region0: #{simple_cnn_forward.1}
  #allocation0 [shape = 'u32[]', space=smem, size = 0x4, offset = 0x4, fixed_abs, tag = 'smem constant byte address 0x4 - core index']
  #allocation1 [shape = 'u32[72,128]{1,0:T(1,128)}', space=vmem, size = 0x9000, scoped, tag = 'internal scratch']
  #allocation2 [shape = 'f32[1,1]{1,0:T(1,128)S(1)}', space=vmem, size = 0x200, scoped, tag = 'scoped memory for simple_cnn_forward.1']
  %s0 = inlined_call_operand.vmem [shape: f32[32,64], index: 0, kind: input, shape index: {}]
  %s1 = inlined_call_operand.vmem [shape: f32[64,256], index: 1, kind: input, shape index: {}]
  %s2 = inlined_call_operand.vmem [shape: f32[1,256], index: 2, kind: input, shape index: {}]
  %s3 = inlined_call_operand.vmem [shape: f32[3,14,32], index: 3, kind: input, shape index: {}]
  %s4 = inlined_call_operand.vmem [shape: f32[3,256,56], index: 4, kind: input, shape index: {}]
  %s5 = inlined_call_operand.vmem [shape: f32[1,56], index: 5, kind: input, shape index: {}]
  %s6 = inlined_call_operand.vmem [shape: f32[3,6,14], index: 6, kind: input, shape index: {}]
  %s7 = inlined_call_operand.vmem [shape: f32[3,56,24], index: 7, kind: input, shape index: {}]
  %s8 = inlined_call_operand.vmem [shape: f32[1,24], index: 8, kind: input, shape index: {}]
  %s9 = inlined_call_operand.vmem [shape: f32[3,2,6], index: 9, kind: input, shape index: {}]
  %s10 = inlined_call_operand.vmem [shape: f32[3,24,8], index: 10, kind: input, shape index: {}]
  %s11 = inlined_call_operand.vmem [shape: f32[1,8], index: 11, kind: input, shape index: {}]
  %s12 = inlined_call_operand.vmem [shape: f32[2,2], index: 12, kind: input, shape index: {}]
  %s13 = inlined_call_operand.vmem [shape: f32[8,1], index: 13, kind: input, shape index: {}]
  %s14 = inlined_call_operand.<no memory space> [shape: f32[1,1], index: 14, kind: input, shape index: {}]
  %s15 = inlined_call_operand.vmem [shape: f32[2,1], index: 15, kind: output, shape index: {}]
  %s16 = sld [smem:[#allocation0]]
  $region70: #{simple_cnn_forward.1} parent=0
    _
  %s18 = ssub.s32 1, %s16
  %s19 = scalar_select 0, %s18, %s16
  %v20 = vstv %s14
  %21 = vst [vmem:[#allocation2] sm:$0x1] %v20
  // Predicated region
  $region2: #{simple_cnn_forward.1} parent=0 // pred_check
    _
  $region3: #{simple_cnn_forward.1} parent=0 // pred_check_branch
    %23 = sbr.rel (0) target = $region5
  $region4: #{simple_cnn_forward.1} parent=0 // pred_region
    _
  $region5: #{simple_cnn_forward.1} parent=0 // pred_fallthru
    _
  // Predicated region
  $region6: #{simple_cnn_forward.1} parent=0 // pred_check
    _
  $region7: #{simple_cnn_forward.1} parent=0 // pred_check_branch
    %25 = sbr.rel (0) target = $region9
  $region8: #{simple_cnn_forward.1} parent=0 // pred_region
    _
  $region9: #{simple_cnn_forward.1} parent=0 // pred_fallthru
    _
  // Predicated region
  $region10: #{simple_cnn_forward.1} parent=0 // pred_check
    _
  $region11: #{simple_cnn_forward.1} parent=0 // pred_check_branch
    %27 = sbr.rel (0) target = $region13
  $region12: #{simple_cnn_forward.1} parent=0 // pred_region
    _
  $region13: #{simple_cnn_forward.1} parent=0 // pred_fallthru
    _
  // Predicated region
  $region14: #{simple_cnn_forward.1} parent=0 // pred_check
    _
  $region15: #{simple_cnn_forward.1} parent=0 // pred_check_branch
    %29 = sbr.rel (0) target = $region17
  $region16: #{simple_cnn_forward.1} parent=0 // pred_region
    _
  $region17: #{simple_cnn_forward.1} parent=0 // pred_fallthru
    _
  // Predicated region
  $region18: #{simple_cnn_forward.1} parent=0 // pred_check
    _
  $region19: #{simple_cnn_forward.1} parent=0 // pred_check_branch
    %31 = sbr.rel (0) target = $region21
  $region20: #{simple_cnn_forward.1} parent=0 // pred_region
    _
  $region21: #{simple_cnn_forward.1} parent=0 // pred_fallthru
    _
  // Predicated region
  $region22: #{simple_cnn_forward.1} parent=0 // pred_check
    _
  $region23: #{simple_cnn_forward.1} parent=0 // pred_check_branch
    %33 = sbr.rel (0) target = $region25
  $region24: #{simple_cnn_forward.1} parent=0 // pred_region
    _
  $region25: #{simple_cnn_forward.1} parent=0 // pred_fallthru
    _
  // Predicated region
  $region26: #{simple_cnn_forward.1} parent=0 // pred_check
    _
  $region27: #{simple_cnn_forward.1} parent=0 // pred_check_branch
    %35 = sbr.rel (0) target = $region29
  $region28: #{simple_cnn_forward.1} parent=0 // pred_region
    _
  $region29: #{simple_cnn_forward.1} parent=0 // pred_fallthru
    _
  // Predicated region
  $region30: #{simple_cnn_forward.1} parent=0 // pred_check
    _
  $region31: #{simple_cnn_forward.1} parent=0 // pred_check_branch
    %37 = sbr.rel (0) target = $region33
  $region32: #{simple_cnn_forward.1} parent=0 // pred_region
    _
  $region33: #{simple_cnn_forward.1} parent=0 // pred_fallthru
    _
  // Predicated region
  $region34: #{simple_cnn_forward.1} parent=0 // pred_check
    _
  $region35: #{simple_cnn_forward.1} parent=0 // pred_check_branch
    %39 = sbr.rel (0) target = $region37
  $region36: #{simple_cnn_forward.1} parent=0 // pred_region
    _
  $region37: #{simple_cnn_forward.1} parent=0 // pred_fallthru
    _
  // Predicated region
  $region38: #{simple_cnn_forward.1} parent=0 // pred_check
    _
  $region39: #{simple_cnn_forward.1} parent=0 // pred_check_branch
    %41 = sbr.rel (0) target = $region41
  $region40: #{simple_cnn_forward.1} parent=0 // pred_region
    _
  $region41: #{simple_cnn_forward.1} parent=0 // pred_fallthru
    _
  // Predicated region
  $region42: #{simple_cnn_forward.1} parent=0 // pred_check
    _
  $region43: #{simple_cnn_forward.1} parent=0 // pred_check_branch
    %43 = sbr.rel (0) target = $region45
  $region44: #{simple_cnn_forward.1} parent=0 // pred_region
    _
  $region45: #{simple_cnn_forward.1} parent=0 // pred_fallthru
    _
  // Predicated region
  $region46: #{simple_cnn_forward.1} parent=0 // pred_check
    _
  $region47: #{simple_cnn_forward.1} parent=0 // pred_check_branch
    %45 = sbr.rel (0) target = $region49
  $region48: #{simple_cnn_forward.1} parent=0 // pred_region
    _
  $region49: #{simple_cnn_forward.1} parent=0 // pred_fallthru
    _
  // Predicated region
  $region50: #{simple_cnn_forward.1} parent=0 // pred_check
    _
  $region51: #{simple_cnn_forward.1} parent=0 // pred_check_branch
    %47 = sbr.rel (0) target = $region53
  $region52: #{simple_cnn_forward.1} parent=0 // pred_region
    _
  $region53: #{simple_cnn_forward.1} parent=0 // pred_fallthru
    _
  // Predicated region
  $region54: #{simple_cnn_forward.1} parent=0 // pred_check
    _
  $region55: #{simple_cnn_forward.1} parent=0 // pred_check_branch
    %49 = sbr.rel (0) target = $region57
  $region56: #{simple_cnn_forward.1} parent=0 // pred_region
    _
  $region57: #{simple_cnn_forward.1} parent=0 // pred_fallthru
    _
  // Predicated region
  $region58: #{simple_cnn_forward.1} parent=0 // pred_check
    _
  $region59: #{simple_cnn_forward.1} parent=0 // pred_check_branch
    %51 = sbr.rel (0) target = $region61
  $region60: #{simple_cnn_forward.1} parent=0 // pred_region
    _
  $region61: #{simple_cnn_forward.1} parent=0 // pred_fallthru
    _
  %v52 = vld [vmem:[%s0] sm:$0xff]
  %v53 = vld [vmem:[%s0 + $0x8] sm:$0xff]
  %v54 = vld [vmem:[%s0 + $0x10] sm:$0xff]
  %v55 = vld [vmem:[%s0 + $0x18] sm:$0xff]
  %v56 = vld [vmem:[%s1] sm:$0xff]
  %v57 = vld [vmem:[%s1 + $0x8] sm:$0xff]
  %v58 = vld [vmem:[%s1 + $0x10] sm:$0xff]
  %v59 = vld [vmem:[%s1 + $0x18] sm:$0xff]
  %v60 = vld [vmem:[%s1 + $0x20] sm:$0xff]
  %v61 = vld [vmem:[%s1 + $0x28] sm:$0xff]
  %v62 = vld [vmem:[%s1 + $0x30] sm:$0xff]
  %v63 = vld [vmem:[%s1 + $0x38] sm:$0xff]
  %v64 = vld [vmem:[%s1 + $0x40] sm:$0xff]
  %v65 = vld [vmem:[%s1 + $0x48] sm:$0xff]
  %v66 = vld [vmem:[%s1 + $0x50] sm:$0xff]
  %v67 = vld [vmem:[%s1 + $0x58] sm:$0xff]
  %v68 = vld [vmem:[%s1 + $0x60] sm:$0xff]
  %v69 = vld [vmem:[%s1 + $0x68] sm:$0xff]
  %v70 = vld [vmem:[%s1 + $0x70] sm:$0xff]
  %v71 = vld [vmem:[%s1 + $0x78] sm:$0xff]
  %v72 = vld [vmem:[%s2] sm:$0x3]
  %v74 = vperm.slane %v72, 0
  %v75 = vperm.slane %v72, 1
  %vm78 = vcmask 523264
  %v80 = vsel %vm78, %v52, 0
  %v83 = vsel %vm78, %v53, 0
  %v86 = vsel %vm78, %v54, 0
  %v89 = vsel %vm78, %v55, 0
  %91 = vmatpush.msra.mxu0 0.0
  %92 = vmatpush.msra.mxu0 0.0
  %93 = vmatpush.msra.mxu0 0.0
  %94 = vmatpush.msra.mxu0 0.0
  %95 = vmatpush.msra.mxu0 0.0
  %96 = vmatpush.msra.mxu0 0.0
  %97 = vmatpush.msra.mxu0 0.0
  %98 = vmatpush.msra.mxu0 0.0
  %99 = vmatpush.msra.mxu0 %v70
  %100 = vmatpush.msra.mxu0 %v68
  %101 = vmatpush.msra.mxu0 %v66
  %102 = vmatpush.msra.mxu0 %v64
  %103 = vmatpush.msra.mxu0 %v62
  %104 = vmatpush.msra.mxu0 %v60
  %105 = vmatpush.msra.mxu0 %v58
  %106 = vmatpush.msra.mxu0 %v56
  %107 = vmatmul.f32.gmra.mxu0 %v80
  %v108 = vpop.f32.mrf.mxu0
  %v109 = vadd.f32 %v74, %v108
  %110 = vmatmul.f32.gmra.mxu0 %v83
  %v111 = vpop.f32.mrf.mxu0
  %v112 = vadd.f32 %v74, %v111
  %113 = vmatmul.f32.gmra.mxu0 %v86
  %v114 = vpop.f32.mrf.mxu0
  %v115 = vadd.f32 %v74, %v114
  %116 = vmatmul.f32.gmra.mxu0 %v89
  %v117 = vpop.f32.mrf.mxu0
  %v118 = vadd.f32 %v74, %v117
  %119 = vdwg.mxu0
  %120 = vmatpush.msra.mxu0 0.0
  %121 = vmatpush.msra.mxu0 0.0
  %122 = vmatpush.msra.mxu0 0.0
  %123 = vmatpush.msra.mxu0 0.0
  %124 = vmatpush.msra.mxu0 0.0
  %125 = vmatpush.msra.mxu0 0.0
  %126 = vmatpush.msra.mxu0 0.0
  %127 = vmatpush.msra.mxu0 0.0
  %128 = vmatpush.msra.mxu0 %v71
  %129 = vmatpush.msra.mxu0 %v69
  %130 = vmatpush.msra.mxu0 %v67
  %131 = vmatpush.msra.mxu0 %v65
  %132 = vmatpush.msra.mxu0 %v63
  %133 = vmatpush.msra.mxu0 %v61
  %134 = vmatpush.msra.mxu0 %v59
  %135 = vmatpush.msra.mxu0 %v57
  %136 = vmatmul.f32.gmra.mxu0 %v80
  %v137 = vpop.f32.mrf.mxu0
  %v138 = vadd.f32 %v75, %v137
  %139 = vmatmul.f32.gmra.mxu0 %v83
  %v140 = vpop.f32.mrf.mxu0
  %v141 = vadd.f32 %v75, %v140
  %142 = vmatmul.f32.gmra.mxu0 %v86
  %v143 = vpop.f32.mrf.mxu0
  %v144 = vadd.f32 %v75, %v143
  %145 = vmatmul.f32.gmra.mxu0 %v89
  %v146 = vpop.f32.mrf.mxu0
  %v147 = vadd.f32 %v75, %v146
  %148 = vdwg.mxu0
  %v149 = vmax.f32 %v109, 0.0
  %v150 = vmax.f32 %v138, 0.0
  %v151 = vmax.f32 %v112, 0.0
  %v152 = vmax.f32 %v141, 0.0
  %v153 = vmax.f32 %v115, 0.0
  %v154 = vmax.f32 %v144, 0.0
  %v155 = vmax.f32 %v118, 0.0
  %v156 = vmax.f32 %v147, 0.0
  %v157 = vld [vmem:[%s3] sm:$0xff]
  %v158 = vld [vmem:[%s3 + $0x8] sm:$0x3f]
  %vm159 = vcmask 261120
  %v161 = vsel %vm159, %v157, 0
  %v164 = vsel %vm159, %v158, 0
  %166 = vmatpush.msra.mxu0 0.0
  %167 = vmatpush.msra.mxu0 0.0
  %168 = vmatpush.msra.mxu0 0.0
  %169 = vmatpush.msra.mxu0 0.0
  %170 = vmatpush.msra.mxu0 0.0
  %171 = vmatpush.msra.mxu0 0.0
  %172 = vmatpush.msra.mxu0 0.0
  %173 = vmatpush.msra.mxu0 0.0
  %174 = vmatpush.msra.mxu0 0.0
  %175 = vmatpush.msra.mxu0 0.0
  %176 = vmatpush.msra.mxu0 0.0
  %177 = vmatpush.msra.mxu0 0.0
  %178 = vmatpush.msra.mxu0 %v155
  %179 = vmatpush.msra.mxu0 %v153
  %180 = vmatpush.msra.mxu0 %v151
  %181 = vmatpush.msra.mxu0 %v149
  %182 = vmatmul.f32.gmra.mxu0 %v161
  %v183 = vpop.f32.mrf.mxu0
  %v184 = vadd.f32 0.0, %v183
  %185 = vmatmul.f32.gmra.mxu0 %v164
  %v186 = vpop.f32.mrf.mxu0
  %v187 = vadd.f32 0.0, %v186
  %188 = vdwg.mxu0
  %189 = vmatpush.msra.mxu0 0.0
  %190 = vmatpush.msra.mxu0 0.0
  %191 = vmatpush.msra.mxu0 0.0
  %192 = vmatpush.msra.mxu0 0.0
  %193 = vmatpush.msra.mxu0 0.0
  %194 = vmatpush.msra.mxu0 0.0
  %195 = vmatpush.msra.mxu0 0.0
  %196 = vmatpush.msra.mxu0 0.0
  %197 = vmatpush.msra.mxu0 0.0
  %198 = vmatpush.msra.mxu0 0.0
  %199 = vmatpush.msra.mxu0 0.0
  %200 = vmatpush.msra.mxu0 0.0
  %201 = vmatpush.msra.mxu0 %v156
  %202 = vmatpush.msra.mxu0 %v154
  %203 = vmatpush.msra.mxu0 %v152
  %204 = vmatpush.msra.mxu0 %v150
  %205 = vmatmul.f32.gmra.mxu0 %v161
  %v206 = vpop.f32.mrf.mxu0
  %v207 = vadd.f32 0.0, %v206
  %208 = vmatmul.f32.gmra.mxu0 %v164
  %v209 = vpop.f32.mrf.mxu0
  %v210 = vadd.f32 0.0, %v209
  %211 = vdwg.mxu0
  %v212 = vld [vmem:[%s4] sm:$0xff]
  %v213 = vld [vmem:[%s4 + $0x8] sm:$0xff]
  %v214 = vld [vmem:[%s4 + $0x10] sm:$0xff]
  %v215 = vld [vmem:[%s4 + $0x18] sm:$0xff]
  %v216 = vld [vmem:[%s4 + $0x20] sm:$0xff]
  %v217 = vld [vmem:[%s4 + $0x28] sm:$0xff]
  %v218 = vld [vmem:[%s4 + $0x30] sm:$0xff]
  %v219 = vld [vmem:[%s4 + $0x38] sm:$0xff]
  %v220 = vld [vmem:[%s4 + $0x40] sm:$0xff]
  %v221 = vld [vmem:[%s4 + $0x48] sm:$0xff]
  %v222 = vld [vmem:[%s4 + $0x50] sm:$0xff]
  %v223 = vld [vmem:[%s4 + $0x58] sm:$0xff]
  %v224 = vld [vmem:[%s4 + $0x60] sm:$0xff]
  %v225 = vld [vmem:[%s4 + $0x68] sm:$0xff]
  %v226 = vld [vmem:[%s4 + $0x70] sm:$0xff]
  %v227 = vld [vmem:[%s4 + $0x78] sm:$0xff]
  %v228 = vld [vmem:[%s4 + $0x80] sm:$0xff]
  %v229 = vld [vmem:[%s4 + $0x88] sm:$0xff]
  %v230 = vld [vmem:[%s4 + $0x90] sm:$0xff]
  %v231 = vld [vmem:[%s4 + $0x98] sm:$0xff]
  %v232 = vld [vmem:[%s4 + $0xa0] sm:$0xff]
  %v233 = vld [vmem:[%s4 + $0xa8] sm:$0xff]
  %v234 = vld [vmem:[%s4 + $0xb0] sm:$0xff]
  %v235 = vld [vmem:[%s4 + $0xb8] sm:$0xff]
  %v236 = vld [vmem:[%s4 + $0xc0] sm:$0xff]
  %v237 = vld [vmem:[%s4 + $0xc8] sm:$0xff]
  %v238 = vld [vmem:[%s4 + $0xd0] sm:$0xff]
  %v239 = vld [vmem:[%s4 + $0xd8] sm:$0xff]
  %v240 = vld [vmem:[%s4 + $0xe0] sm:$0xff]
  %v241 = vld [vmem:[%s4 + $0xe8] sm:$0xff]
  %v242 = vld [vmem:[%s4 + $0xf0] sm:$0xff]
  %v243 = vld [vmem:[%s4 + $0xf8] sm:$0xff]
  %s244 = scalar_lea.vmem %s3, 16
  %v245 = vld [vmem:[%s244] sm:$0xff]
  %v246 = vld [vmem:[%s244 + $0x8] sm:$0x3f]
  %v248 = vsel %vm159, %v245, 0
  %v251 = vsel %vm159, %v246, 0
  %253 = vmatpush.msra.mxu0 0.0
  %254 = vmatpush.msra.mxu0 0.0
  %255 = vmatpush.msra.mxu0 0.0
  %256 = vmatpush.msra.mxu0 0.0
  %257 = vmatpush.msra.mxu0 0.0
  %258 = vmatpush.msra.mxu0 0.0
  %259 = vmatpush.msra.mxu0 0.0
  %260 = vmatpush.msra.mxu0 0.0
  %261 = vmatpush.msra.mxu0 0.0
  %262 = vmatpush.msra.mxu0 0.0
  %263 = vmatpush.msra.mxu0 0.0
  %264 = vmatpush.msra.mxu0 0.0
  %265 = vmatpush.msra.mxu0 %v155
  %266 = vmatpush.msra.mxu0 %v153
  %267 = vmatpush.msra.mxu0 %v151
  %268 = vmatpush.msra.mxu0 %v149
  %269 = vmatmul.f32.gmra.mxu0 %v248
  %v270 = vpop.f32.mrf.mxu0
  %v271 = vadd.f32 0.0, %v270
  %272 = vmatmul.f32.gmra.mxu0 %v251
  %v273 = vpop.f32.mrf.mxu0
  %v274 = vadd.f32 0.0, %v273
  %275 = vdwg.mxu0
  %276 = vmatpush.msra.mxu0 0.0
  %277 = vmatpush.msra.mxu0 0.0
  %278 = vmatpush.msra.mxu0 0.0
  %279 = vmatpush.msra.mxu0 0.0
  %280 = vmatpush.msra.mxu0 0.0
  %281 = vmatpush.msra.mxu0 0.0
  %282 = vmatpush.msra.mxu0 0.0
  %283 = vmatpush.msra.mxu0 0.0
  %284 = vmatpush.msra.mxu0 0.0
  %285 = vmatpush.msra.mxu0 0.0
  %286 = vmatpush.msra.mxu0 0.0
  %287 = vmatpush.msra.mxu0 0.0
  %288 = vmatpush.msra.mxu0 %v156
  %289 = vmatpush.msra.mxu0 %v154
  %290 = vmatpush.msra.mxu0 %v152
  %291 = vmatpush.msra.mxu0 %v150
  %292 = vmatmul.f32.gmra.mxu0 %v248
  %v293 = vpop.f32.mrf.mxu0
  %v294 = vadd.f32 0.0, %v293
  %295 = vmatmul.f32.gmra.mxu0 %v251
  %v296 = vpop.f32.mrf.mxu0
  %v297 = vadd.f32 0.0, %v296
  %298 = vdwg.mxu0
  %s299 = scalar_lea.vmem %s4, 256
  %v300 = vld [vmem:[%s299] sm:$0xff]
  %v301 = vld [vmem:[%s299 + $0x8] sm:$0xff]
  %v302 = vld [vmem:[%s299 + $0x10] sm:$0xff]
  %v303 = vld [vmem:[%s299 + $0x18] sm:$0xff]
  %v304 = vld [vmem:[%s299 + $0x20] sm:$0xff]
  %v305 = vld [vmem:[%s299 + $0x28] sm:$0xff]
  %v306 = vld [vmem:[%s299 + $0x30] sm:$0xff]
  %v307 = vld [vmem:[%s299 + $0x38] sm:$0xff]
  %v308 = vld [vmem:[%s299 + $0x40] sm:$0xff]
  %v309 = vld [vmem:[%s299 + $0x48] sm:$0xff]
  %v310 = vld [vmem:[%s299 + $0x50] sm:$0xff]
  %v311 = vld [vmem:[%s299 + $0x58] sm:$0xff]
  %v312 = vld [vmem:[%s299 + $0x60] sm:$0xff]
  %v313 = vld [vmem:[%s299 + $0x68] sm:$0xff]
  %v314 = vld [vmem:[%s299 + $0x70] sm:$0xff]
  %v315 = vld [vmem:[%s299 + $0x78] sm:$0xff]
  %v316 = vld [vmem:[%s299 + $0x80] sm:$0xff]
  %v317 = vld [vmem:[%s299 + $0x88] sm:$0xff]
  %v318 = vld [vmem:[%s299 + $0x90] sm:$0xff]
  %v319 = vld [vmem:[%s299 + $0x98] sm:$0xff]
  %v320 = vld [vmem:[%s299 + $0xa0] sm:$0xff]
  %v321 = vld [vmem:[%s299 + $0xa8] sm:$0xff]
  %v322 = vld [vmem:[%s299 + $0xb0] sm:$0xff]
  %v323 = vld [vmem:[%s299 + $0xb8] sm:$0xff]
  %v324 = vld [vmem:[%s299 + $0xc0] sm:$0xff]
  %v325 = vld [vmem:[%s299 + $0xc8] sm:$0xff]
  %v326 = vld [vmem:[%s299 + $0xd0] sm:$0xff]
  %v327 = vld [vmem:[%s299 + $0xd8] sm:$0xff]
  %v328 = vld [vmem:[%s299 + $0xe0] sm:$0xff]
  %v329 = vld [vmem:[%s299 + $0xe8] sm:$0xff]
  %v330 = vld [vmem:[%s299 + $0xf0] sm:$0xff]
  %v331 = vld [vmem:[%s299 + $0xf8] sm:$0xff]
  %332 = vmatpush.msra.mxu0 %v315
  %333 = vmatpush.msra.mxu0 %v314
  %334 = vmatpush.msra.mxu0 %v313
  %335 = vmatpush.msra.mxu0 %v312
  %336 = vmatpush.msra.mxu0 %v311
  %337 = vmatpush.msra.mxu0 %v310
  %338 = vmatpush.msra.mxu0 %v309
  %339 = vmatpush.msra.mxu0 %v308
  %340 = vmatpush.msra.mxu0 %v307
  %341 = vmatpush.msra.mxu0 %v306
  %342 = vmatpush.msra.mxu0 %v305
  %343 = vmatpush.msra.mxu0 %v304
  %344 = vmatpush.msra.mxu0 %v303
  %345 = vmatpush.msra.mxu0 %v302
  %346 = vmatpush.msra.mxu0 %v301
  %347 = vmatpush.msra.mxu0 %v300
  %348 = vmatmul.f32.gmra.mxu0 %v271
  %v349 = vpop.f32.mrf.mxu0
  %v350 = vadd.f32 0.0, %v349
  %351 = vmatmul.f32.gmra.mxu0 %v274
  %v352 = vpop.f32.mrf.mxu0
  %v353 = vadd.f32 0.0, %v352
  %354 = vdwg.mxu0
  %355 = vmatpush.msra.mxu0 %v331
  %356 = vmatpush.msra.mxu0 %v330
  %357 = vmatpush.msra.mxu0 %v329
  %358 = vmatpush.msra.mxu0 %v328
  %359 = vmatpush.msra.mxu0 %v327
  %360 = vmatpush.msra.mxu0 %v326
  %361 = vmatpush.msra.mxu0 %v325
  %362 = vmatpush.msra.mxu0 %v324
  %363 = vmatpush.msra.mxu0 %v323
  %364 = vmatpush.msra.mxu0 %v322
  %365 = vmatpush.msra.mxu0 %v321
  %366 = vmatpush.msra.mxu0 %v320
  %367 = vmatpush.msra.mxu0 %v319
  %368 = vmatpush.msra.mxu0 %v318
  %369 = vmatpush.msra.mxu0 %v317
  %370 = vmatpush.msra.mxu0 %v316
  %371 = vmatmul.f32.gmra.mxu0 %v294
  %v372 = vpop.f32.mrf.mxu0
  %v373 = vadd.f32 %v350, %v372
  %374 = vmatmul.f32.gmra.mxu0 %v297
  %v375 = vpop.f32.mrf.mxu0
  %v376 = vadd.f32 %v353, %v375
  %377 = vdwg.mxu0
  %378 = vmatpush.msra.mxu0 %v227
  %379 = vmatpush.msra.mxu0 %v226
  %380 = vmatpush.msra.mxu0 %v225
  %381 = vmatpush.msra.mxu0 %v224
  %382 = vmatpush.msra.mxu0 %v223
  %383 = vmatpush.msra.mxu0 %v222
  %384 = vmatpush.msra.mxu0 %v221
  %385 = vmatpush.msra.mxu0 %v220
  %386 = vmatpush.msra.mxu0 %v219
  %387 = vmatpush.msra.mxu0 %v218
  %388 = vmatpush.msra.mxu0 %v217
  %389 = vmatpush.msra.mxu0 %v216
  %390 = vmatpush.msra.mxu0 %v215
  %391 = vmatpush.msra.mxu0 %v214
  %392 = vmatpush.msra.mxu0 %v213
  %393 = vmatpush.msra.mxu0 %v212
  %394 = vmatmul.f32.gmra.mxu0 %v184
  %v395 = vpop.f32.mrf.mxu0
  %v396 = vadd.f32 %v373, %v395
  %397 = vmatmul.f32.gmra.mxu0 %v187
  %v398 = vpop.f32.mrf.mxu0
  %v399 = vadd.f32 %v376, %v398
  %400 = vdwg.mxu0
  %401 = vmatpush.msra.mxu0 %v243
  %402 = vmatpush.msra.mxu0 %v242
  %403 = vmatpush.msra.mxu0 %v241
  %404 = vmatpush.msra.mxu0 %v240
  %405 = vmatpush.msra.mxu0 %v239
  %406 = vmatpush.msra.mxu0 %v238
  %407 = vmatpush.msra.mxu0 %v237
  %408 = vmatpush.msra.mxu0 %v236
  %409 = vmatpush.msra.mxu0 %v235
  %410 = vmatpush.msra.mxu0 %v234
  %411 = vmatpush.msra.mxu0 %v233
  %412 = vmatpush.msra.mxu0 %v232
  %413 = vmatpush.msra.mxu0 %v231
  %414 = vmatpush.msra.mxu0 %v230
  %415 = vmatpush.msra.mxu0 %v229
  %416 = vmatpush.msra.mxu0 %v228
  %417 = vmatmul.f32.gmra.mxu0 %v207
  %v418 = vpop.f32.mrf.mxu0
  %v419 = vadd.f32 %v396, %v418
  %420 = vmatmul.f32.gmra.mxu0 %v210
  %v421 = vpop.f32.mrf.mxu0
  %v422 = vadd.f32 %v399, %v421
  %423 = vdwg.mxu0
  %s424 = scalar_lea.vmem %s3, 32
  %v425 = vld [vmem:[%s424] sm:$0xff]
  %v426 = vld [vmem:[%s424 + $0x8] sm:$0x3f]
  %v428 = vsel %vm159, %v425, 0
  %v431 = vsel %vm159, %v426, 0
  %433 = vmatpush.msra.mxu0 0.0
  %434 = vmatpush.msra.mxu0 0.0
  %435 = vmatpush.msra.mxu0 0.0
  %436 = vmatpush.msra.mxu0 0.0
  %437 = vmatpush.msra.mxu0 0.0
  %438 = vmatpush.msra.mxu0 0.0
  %439 = vmatpush.msra.mxu0 0.0
  %440 = vmatpush.msra.mxu0 0.0
  %441 = vmatpush.msra.mxu0 0.0
  %442 = vmatpush.msra.mxu0 0.0
  %443 = vmatpush.msra.mxu0 0.0
  %444 = vmatpush.msra.mxu0 0.0
  %445 = vmatpush.msra.mxu0 %v155
  %446 = vmatpush.msra.mxu0 %v153
  %447 = vmatpush.msra.mxu0 %v151
  %448 = vmatpush.msra.mxu0 %v149
  %449 = vmatmul.f32.gmra.mxu0 %v428
  %v450 = vpop.f32.mrf.mxu0
  %v451 = vadd.f32 0.0, %v450
  %452 = vmatmul.f32.gmra.mxu0 %v431
  %v453 = vpop.f32.mrf.mxu0
  %v454 = vadd.f32 0.0, %v453
  %455 = vdwg.mxu0
  %456 = vmatpush.msra.mxu0 0.0
  %457 = vmatpush.msra.mxu0 0.0
  %458 = vmatpush.msra.mxu0 0.0
  %459 = vmatpush.msra.mxu0 0.0
  %460 = vmatpush.msra.mxu0 0.0
  %461 = vmatpush.msra.mxu0 0.0
  %462 = vmatpush.msra.mxu0 0.0
  %463 = vmatpush.msra.mxu0 0.0
  %464 = vmatpush.msra.mxu0 0.0
  %465 = vmatpush.msra.mxu0 0.0
  %466 = vmatpush.msra.mxu0 0.0
  %467 = vmatpush.msra.mxu0 0.0
  %468 = vmatpush.msra.mxu0 %v156
  %469 = vmatpush.msra.mxu0 %v154
  %470 = vmatpush.msra.mxu0 %v152
  %471 = vmatpush.msra.mxu0 %v150
  %472 = vmatmul.f32.gmra.mxu0 %v428
  %v473 = vpop.f32.mrf.mxu0
  %v474 = vadd.f32 0.0, %v473
  %475 = vmatmul.f32.gmra.mxu0 %v431
  %v476 = vpop.f32.mrf.mxu0
  %v477 = vadd.f32 0.0, %v476
  %478 = vdwg.mxu0
  %s479 = scalar_lea.vmem %s4, 512
  %v480 = vld [vmem:[%s479] sm:$0xff]
  %v481 = vld [vmem:[%s479 + $0x8] sm:$0xff]
  %v482 = vld [vmem:[%s479 + $0x10] sm:$0xff]
  %v483 = vld [vmem:[%s479 + $0x18] sm:$0xff]
  %v484 = vld [vmem:[%s479 + $0x20] sm:$0xff]
  %v485 = vld [vmem:[%s479 + $0x28] sm:$0xff]
  %v486 = vld [vmem:[%s479 + $0x30] sm:$0xff]
  %v487 = vld [vmem:[%s479 + $0x38] sm:$0xff]
  %v488 = vld [vmem:[%s479 + $0x40] sm:$0xff]
  %v489 = vld [vmem:[%s479 + $0x48] sm:$0xff]
  %v490 = vld [vmem:[%s479 + $0x50] sm:$0xff]
  %v491 = vld [vmem:[%s479 + $0x58] sm:$0xff]
  %v492 = vld [vmem:[%s479 + $0x60] sm:$0xff]
  %v493 = vld [vmem:[%s479 + $0x68] sm:$0xff]
  %v494 = vld [vmem:[%s479 + $0x70] sm:$0xff]
  %v495 = vld [vmem:[%s479 + $0x78] sm:$0xff]
  %v496 = vld [vmem:[%s479 + $0x80] sm:$0xff]
  %v497 = vld [vmem:[%s479 + $0x88] sm:$0xff]
  %v498 = vld [vmem:[%s479 + $0x90] sm:$0xff]
  %v499 = vld [vmem:[%s479 + $0x98] sm:$0xff]
  %v500 = vld [vmem:[%s479 + $0xa0] sm:$0xff]
  %v501 = vld [vmem:[%s479 + $0xa8] sm:$0xff]
  %v502 = vld [vmem:[%s479 + $0xb0] sm:$0xff]
  %v503 = vld [vmem:[%s479 + $0xb8] sm:$0xff]
  %v504 = vld [vmem:[%s479 + $0xc0] sm:$0xff]
  %v505 = vld [vmem:[%s479 + $0xc8] sm:$0xff]
  %v506 = vld [vmem:[%s479 + $0xd0] sm:$0xff]
  %v507 = vld [vmem:[%s479 + $0xd8] sm:$0xff]
  %v508 = vld [vmem:[%s479 + $0xe0] sm:$0xff]
  %v509 = vld [vmem:[%s479 + $0xe8] sm:$0xff]
  %v510 = vld [vmem:[%s479 + $0xf0] sm:$0xff]
  %v511 = vld [vmem:[%s479 + $0xf8] sm:$0xff]
  %512 = vmatpush.msra.mxu0 %v495
  %513 = vmatpush.msra.mxu0 %v494
  %514 = vmatpush.msra.mxu0 %v493
  %515 = vmatpush.msra.mxu0 %v492
  %516 = vmatpush.msra.mxu0 %v491
  %517 = vmatpush.msra.mxu0 %v490
  %518 = vmatpush.msra.mxu0 %v489
  %519 = vmatpush.msra.mxu0 %v488
  %520 = vmatpush.msra.mxu0 %v487
  %521 = vmatpush.msra.mxu0 %v486
  %522 = vmatpush.msra.mxu0 %v485
  %523 = vmatpush.msra.mxu0 %v484
  %524 = vmatpush.msra.mxu0 %v483
  %525 = vmatpush.msra.mxu0 %v482
  %526 = vmatpush.msra.mxu0 %v481
  %527 = vmatpush.msra.mxu0 %v480
  %528 = vmatmul.f32.gmra.mxu0 %v451
  %v529 = vpop.f32.mrf.mxu0
  %v530 = vadd.f32 0.0, %v529
  %531 = vmatmul.f32.gmra.mxu0 %v454
  %v532 = vpop.f32.mrf.mxu0
  %v533 = vadd.f32 0.0, %v532
  %534 = vdwg.mxu0
  %535 = vmatpush.msra.mxu0 %v511
  %536 = vmatpush.msra.mxu0 %v510
  %537 = vmatpush.msra.mxu0 %v509
  %538 = vmatpush.msra.mxu0 %v508
  %539 = vmatpush.msra.mxu0 %v507
  %540 = vmatpush.msra.mxu0 %v506
  %541 = vmatpush.msra.mxu0 %v505
  %542 = vmatpush.msra.mxu0 %v504
  %543 = vmatpush.msra.mxu0 %v503
  %544 = vmatpush.msra.mxu0 %v502
  %545 = vmatpush.msra.mxu0 %v501
  %546 = vmatpush.msra.mxu0 %v500
  %547 = vmatpush.msra.mxu0 %v499
  %548 = vmatpush.msra.mxu0 %v498
  %549 = vmatpush.msra.mxu0 %v497
  %550 = vmatpush.msra.mxu0 %v496
  %551 = vmatmul.f32.gmra.mxu0 %v474
  %v552 = vpop.f32.mrf.mxu0
  %v553 = vadd.f32 %v530, %v552
  %554 = vmatmul.f32.gmra.mxu0 %v477
  %v555 = vpop.f32.mrf.mxu0
  %v556 = vadd.f32 %v533, %v555
  %557 = vdwg.mxu0
  %v558 = vadd.f32 %v419, %v553
  %v559 = vadd.f32 %v422, %v556
  %v560 = vld [vmem:[%s5] sm:$0x1]
  %v562 = vperm.slane %v560, 0
  %v564 = vadd.f32 %v558, %v562
  %v565 = vadd.f32 %v559, %v562
  %v566 = vmax.f32 %v564, 0.0
  %v567 = vmax.f32 %v565, 0.0
  %v568 = vld [vmem:[%s6] sm:$0x3f]
  %vm569 = vcmask 113664
  %v571 = vsel %vm569, %v568, 0
  %vm573 = vcmask 1045504
  %v575 = vsel %vm573, %v567, 0
  %577 = vmatpush.msra.mxu0 0.0
  %578 = vmatpush.msra.mxu0 0.0
  %579 = vmatpush.msra.mxu0 0.0
  %580 = vmatpush.msra.mxu0 0.0
  %581 = vmatpush.msra.mxu0 0.0
  %582 = vmatpush.msra.mxu0 0.0
  %583 = vmatpush.msra.mxu0 0.0
  %584 = vmatpush.msra.mxu0 0.0
  %585 = vmatpush.msra.mxu0 0.0
  %586 = vmatpush.msra.mxu0 0.0
  %587 = vmatpush.msra.mxu0 0.0
  %588 = vmatpush.msra.mxu0 0.0
  %589 = vmatpush.msra.mxu0 0.0
  %590 = vmatpush.msra.mxu0 0.0
  %591 = vmatpush.msra.mxu0 %v575
  %592 = vmatpush.msra.mxu0 %v566
  %593 = vmatmul.f32.gmra.mxu0 %v571
  %v594 = vpop.f32.mrf.mxu0
  %v595 = vadd.f32 0.0, %v594
  %596 = vdwg.mxu0
  %v597 = vld [vmem:[%s7] sm:$0xff]
  %v598 = vld [vmem:[%s7 + $0x8] sm:$0xff]
  %v599 = vld [vmem:[%s7 + $0x10] sm:$0xff]
  %v600 = vld [vmem:[%s7 + $0x18] sm:$0xff]
  %v601 = vld [vmem:[%s7 + $0x20] sm:$0xff]
  %v602 = vld [vmem:[%s7 + $0x28] sm:$0xff]
  %v603 = vld [vmem:[%s7 + $0x30] sm:$0xff]
  %s604 = scalar_lea.vmem %s6, 8
  %v605 = vld [vmem:[%s604] sm:$0x3f]
  %v607 = vsel %vm569, %v605, 0
  %609 = vmatpush.msra.mxu0 0.0
  %610 = vmatpush.msra.mxu0 0.0
  %611 = vmatpush.msra.mxu0 0.0
  %612 = vmatpush.msra.mxu0 0.0
  %613 = vmatpush.msra.mxu0 0.0
  %614 = vmatpush.msra.mxu0 0.0
  %615 = vmatpush.msra.mxu0 0.0
  %616 = vmatpush.msra.mxu0 0.0
  %617 = vmatpush.msra.mxu0 0.0
  %618 = vmatpush.msra.mxu0 0.0
  %619 = vmatpush.msra.mxu0 0.0
  %620 = vmatpush.msra.mxu0 0.0
  %621 = vmatpush.msra.mxu0 0.0
  %622 = vmatpush.msra.mxu0 0.0
  %623 = vmatpush.msra.mxu0 %v575
  %624 = vmatpush.msra.mxu0 %v566
  %625 = vmatmul.f32.gmra.mxu0 %v607
  %v626 = vpop.f32.mrf.mxu0
  %v627 = vadd.f32 0.0, %v626
  %628 = vdwg.mxu0
  %s629 = scalar_lea.vmem %s7, 56
  %v630 = vld [vmem:[%s629] sm:$0xff]
  %v631 = vld [vmem:[%s629 + $0x8] sm:$0xff]
  %v632 = vld [vmem:[%s629 + $0x10] sm:$0xff]
  %v633 = vld [vmem:[%s629 + $0x18] sm:$0xff]
  %v634 = vld [vmem:[%s629 + $0x20] sm:$0xff]
  %v635 = vld [vmem:[%s629 + $0x28] sm:$0xff]
  %v636 = vld [vmem:[%s629 + $0x30] sm:$0xff]
  %vm637 = vcmask 457728
  %v639 = vsel %vm637, %v627, 0
  %641 = vmatpush.msra.mxu0 0.0
  %642 = vmatpush.msra.mxu0 0.0
  %643 = vmatpush.msra.mxu0 0.0
  %644 = vmatpush.msra.mxu0 0.0
  %645 = vmatpush.msra.mxu0 0.0
  %646 = vmatpush.msra.mxu0 0.0
  %647 = vmatpush.msra.mxu0 0.0
  %648 = vmatpush.msra.mxu0 0.0
  %649 = vmatpush.msra.mxu0 0.0
  %650 = vmatpush.msra.mxu0 %v636
  %651 = vmatpush.msra.mxu0 %v635
  %652 = vmatpush.msra.mxu0 %v634
  %653 = vmatpush.msra.mxu0 %v633
  %654 = vmatpush.msra.mxu0 %v632
  %655 = vmatpush.msra.mxu0 %v631
  %656 = vmatpush.msra.mxu0 %v630
  %657 = vmatmul.f32.gmra.mxu0 %v639
  %v658 = vpop.f32.mrf.mxu0
  %v659 = vadd.f32 0.0, %v658
  %660 = vdwg.mxu0
  %v662 = vsel %vm637, %v595, 0
  %664 = vmatpush.msra.mxu0 0.0
  %665 = vmatpush.msra.mxu0 0.0
  %666 = vmatpush.msra.mxu0 0.0
  %667 = vmatpush.msra.mxu0 0.0
  %668 = vmatpush.msra.mxu0 0.0
  %669 = vmatpush.msra.mxu0 0.0
  %670 = vmatpush.msra.mxu0 0.0
  %671 = vmatpush.msra.mxu0 0.0
  %672 = vmatpush.msra.mxu0 0.0
  %673 = vmatpush.msra.mxu0 %v603
  %674 = vmatpush.msra.mxu0 %v602
  %675 = vmatpush.msra.mxu0 %v601
  %676 = vmatpush.msra.mxu0 %v600
  %677 = vmatpush.msra.mxu0 %v599
  %678 = vmatpush.msra.mxu0 %v598
  %679 = vmatpush.msra.mxu0 %v597
  %680 = vmatmul.f32.gmra.mxu0 %v662
  %v681 = vpop.f32.mrf.mxu0
  %v682 = vadd.f32 %v659, %v681
  %683 = vdwg.mxu0
  %s684 = scalar_lea.vmem %s6, 16
  %v685 = vld [vmem:[%s684] sm:$0x3f]
  %v687 = vsel %vm569, %v685, 0
  %689 = vmatpush.msra.mxu0 0.0
  %690 = vmatpush.msra.mxu0 0.0
  %691 = vmatpush.msra.mxu0 0.0
  %692 = vmatpush.msra.mxu0 0.0
  %693 = vmatpush.msra.mxu0 0.0
  %694 = vmatpush.msra.mxu0 0.0
  %695 = vmatpush.msra.mxu0 0.0
  %696 = vmatpush.msra.mxu0 0.0
  %697 = vmatpush.msra.mxu0 0.0
  %698 = vmatpush.msra.mxu0 0.0
  %699 = vmatpush.msra.mxu0 0.0
  %700 = vmatpush.msra.mxu0 0.0
  %701 = vmatpush.msra.mxu0 0.0
  %702 = vmatpush.msra.mxu0 0.0
  %703 = vmatpush.msra.mxu0 %v575
  %704 = vmatpush.msra.mxu0 %v566
  %705 = vmatmul.f32.gmra.mxu0 %v687
  %v706 = vpop.f32.mrf.mxu0
  %v707 = vadd.f32 0.0, %v706
  %708 = vdwg.mxu0
  %s709 = scalar_lea.vmem %s7, 112
  %v710 = vld [vmem:[%s709] sm:$0xff]
  %v711 = vld [vmem:[%s709 + $0x8] sm:$0xff]
  %v712 = vld [vmem:[%s709 + $0x10] sm:$0xff]
  %v713 = vld [vmem:[%s709 + $0x18] sm:$0xff]
  %v714 = vld [vmem:[%s709 + $0x20] sm:$0xff]
  %v715 = vld [vmem:[%s709 + $0x28] sm:$0xff]
  %v716 = vld [vmem:[%s709 + $0x30] sm:$0xff]
  %v718 = vsel %vm637, %v707, 0
  %720 = vmatpush.msra.mxu0 0.0
  %721 = vmatpush.msra.mxu0 0.0
  %722 = vmatpush.msra.mxu0 0.0
  %723 = vmatpush.msra.mxu0 0.0
  %724 = vmatpush.msra.mxu0 0.0
  %725 = vmatpush.msra.mxu0 0.0
  %726 = vmatpush.msra.mxu0 0.0
  %727 = vmatpush.msra.mxu0 0.0
  %728 = vmatpush.msra.mxu0 0.0
  %729 = vmatpush.msra.mxu0 %v716
  %730 = vmatpush.msra.mxu0 %v715
  %731 = vmatpush.msra.mxu0 %v714
  %732 = vmatpush.msra.mxu0 %v713
  %733 = vmatpush.msra.mxu0 %v712
  %734 = vmatpush.msra.mxu0 %v711
  %735 = vmatpush.msra.mxu0 %v710
  %736 = vmatmul.f32.gmra.mxu0 %v718
  %v737 = vpop.f32.mrf.mxu0
  %v738 = vadd.f32 0.0, %v737
  %739 = vdwg.mxu0
  %v740 = vadd.f32 %v682, %v738
  %v741 = vld [vmem:[%s8] sm:$0x1]
  %v743 = vperm.slane %v741, 0
  %v745 = vadd.f32 %v740, %v743
  %v746 = vmax.f32 %v745, 0.0
  %v747 = vld [vmem:[%s9] sm:$0x3]
  %vm748 = vcmask 48128
  %v750 = vsel %vm748, %v747, 0
  %v753 = vsel %vm573, %v746, 0
  %755 = vmatpush.msra.mxu0 0.0
  %756 = vmatpush.msra.mxu0 0.0
  %757 = vmatpush.msra.mxu0 0.0
  %758 = vmatpush.msra.mxu0 0.0
  %759 = vmatpush.msra.mxu0 0.0
  %760 = vmatpush.msra.mxu0 0.0
  %761 = vmatpush.msra.mxu0 0.0
  %762 = vmatpush.msra.mxu0 0.0
  %763 = vmatpush.msra.mxu0 0.0
  %764 = vmatpush.msra.mxu0 0.0
  %765 = vmatpush.msra.mxu0 0.0
  %766 = vmatpush.msra.mxu0 0.0
  %767 = vmatpush.msra.mxu0 0.0
  %768 = vmatpush.msra.mxu0 0.0
  %769 = vmatpush.msra.mxu0 0.0
  %770 = vmatpush.msra.mxu0 %v753
  %771 = vmatmul.f32.gmra.mxu0 %v750
  %v772 = vpop.f32.mrf.mxu0
  %v773 = vadd.f32 0.0, %v772
  %774 = vdwg.mxu0
  %v775 = vld [vmem:[%s10] sm:$0xff]
  %v776 = vld [vmem:[%s10 + $0x8] sm:$0xff]
  %v777 = vld [vmem:[%s10 + $0x10] sm:$0xff]
  %s778 = scalar_lea.vmem %s9, 2
  %v779 = vld [vmem:[%s778] sm:$0x3]
  %v781 = vsel %vm748, %v779, 0
  %783 = vmatpush.msra.mxu0 0.0
  %784 = vmatpush.msra.mxu0 0.0
  %785 = vmatpush.msra.mxu0 0.0
  %786 = vmatpush.msra.mxu0 0.0
  %787 = vmatpush.msra.mxu0 0.0
  %788 = vmatpush.msra.mxu0 0.0
  %789 = vmatpush.msra.mxu0 0.0
  %790 = vmatpush.msra.mxu0 0.0
  %791 = vmatpush.msra.mxu0 0.0
  %792 = vmatpush.msra.mxu0 0.0
  %793 = vmatpush.msra.mxu0 0.0
  %794 = vmatpush.msra.mxu0 0.0
  %795 = vmatpush.msra.mxu0 0.0
  %796 = vmatpush.msra.mxu0 0.0
  %797 = vmatpush.msra.mxu0 0.0
  %798 = vmatpush.msra.mxu0 %v753
  %799 = vmatmul.f32.gmra.mxu0 %v781
  %v800 = vpop.f32.mrf.mxu0
  %v801 = vadd.f32 0.0, %v800
  %802 = vdwg.mxu0
  %s803 = scalar_lea.vmem %s10, 24
  %v804 = vld [vmem:[%s803] sm:$0xff]
  %v805 = vld [vmem:[%s803 + $0x8] sm:$0xff]
  %v806 = vld [vmem:[%s803 + $0x10] sm:$0xff]
  %vm807 = vcmask 195584
  %v809 = vsel %vm807, %v801, 0
  %811 = vmatpush.msra.mxu0 0.0
  %812 = vmatpush.msra.mxu0 0.0
  %813 = vmatpush.msra.mxu0 0.0
  %814 = vmatpush.msra.mxu0 0.0
  %815 = vmatpush.msra.mxu0 0.0
  %816 = vmatpush.msra.mxu0 0.0
  %817 = vmatpush.msra.mxu0 0.0
  %818 = vmatpush.msra.mxu0 0.0
  %819 = vmatpush.msra.mxu0 0.0
  %820 = vmatpush.msra.mxu0 0.0
  %821 = vmatpush.msra.mxu0 0.0
  %822 = vmatpush.msra.mxu0 0.0
  %823 = vmatpush.msra.mxu0 0.0
  %824 = vmatpush.msra.mxu0 %v806
  %825 = vmatpush.msra.mxu0 %v805
  %826 = vmatpush.msra.mxu0 %v804
  %827 = vmatmul.f32.gmra.mxu0 %v809
  %v828 = vpop.f32.mrf.mxu0
  %v829 = vadd.f32 0.0, %v828
  %830 = vdwg.mxu0
  %v832 = vsel %vm807, %v773, 0
  %834 = vmatpush.msra.mxu0 0.0
  %835 = vmatpush.msra.mxu0 0.0
  %836 = vmatpush.msra.mxu0 0.0
  %837 = vmatpush.msra.mxu0 0.0
  %838 = vmatpush.msra.mxu0 0.0
  %839 = vmatpush.msra.mxu0 0.0
  %840 = vmatpush.msra.mxu0 0.0
  %841 = vmatpush.msra.mxu0 0.0
  %842 = vmatpush.msra.mxu0 0.0
  %843 = vmatpush.msra.mxu0 0.0
  %844 = vmatpush.msra.mxu0 0.0
  %845 = vmatpush.msra.mxu0 0.0
  %846 = vmatpush.msra.mxu0 0.0
  %847 = vmatpush.msra.mxu0 %v777
  %848 = vmatpush.msra.mxu0 %v776
  %849 = vmatpush.msra.mxu0 %v775
  %850 = vmatmul.f32.gmra.mxu0 %v832
  %v851 = vpop.f32.mrf.mxu0
  %v852 = vadd.f32 %v829, %v851
  %853 = vdwg.mxu0
  %s854 = scalar_lea.vmem %s9, 4
  %v855 = vld [vmem:[%s854] sm:$0x3]
  %v857 = vsel %vm748, %v855, 0
  %859 = vmatpush.msra.mxu0 0.0
  %860 = vmatpush.msra.mxu0 0.0
  %861 = vmatpush.msra.mxu0 0.0
  %862 = vmatpush.msra.mxu0 0.0
  %863 = vmatpush.msra.mxu0 0.0
  %864 = vmatpush.msra.mxu0 0.0
  %865 = vmatpush.msra.mxu0 0.0
  %866 = vmatpush.msra.mxu0 0.0
  %867 = vmatpush.msra.mxu0 0.0
  %868 = vmatpush.msra.mxu0 0.0
  %869 = vmatpush.msra.mxu0 0.0
  %870 = vmatpush.msra.mxu0 0.0
  %871 = vmatpush.msra.mxu0 0.0
  %872 = vmatpush.msra.mxu0 0.0
  %873 = vmatpush.msra.mxu0 0.0
  %874 = vmatpush.msra.mxu0 %v753
  %875 = vmatmul.f32.gmra.mxu0 %v857
  %v876 = vpop.f32.mrf.mxu0
  %v877 = vadd.f32 0.0, %v876
  %878 = vdwg.mxu0
  %s879 = scalar_lea.vmem %s10, 48
  %v880 = vld [vmem:[%s879] sm:$0xff]
  %v881 = vld [vmem:[%s879 + $0x8] sm:$0xff]
  %v882 = vld [vmem:[%s879 + $0x10] sm:$0xff]
  %v884 = vsel %vm807, %v877, 0
  %886 = vmatpush.msra.mxu0 0.0
  %887 = vmatpush.msra.mxu0 0.0
  %888 = vmatpush.msra.mxu0 0.0
  %889 = vmatpush.msra.mxu0 0.0
  %890 = vmatpush.msra.mxu0 0.0
  %891 = vmatpush.msra.mxu0 0.0
  %892 = vmatpush.msra.mxu0 0.0
  %893 = vmatpush.msra.mxu0 0.0
  %894 = vmatpush.msra.mxu0 0.0
  %895 = vmatpush.msra.mxu0 0.0
  %896 = vmatpush.msra.mxu0 0.0
  %897 = vmatpush.msra.mxu0 0.0
  %898 = vmatpush.msra.mxu0 0.0
  %899 = vmatpush.msra.mxu0 %v882
  %900 = vmatpush.msra.mxu0 %v881
  %901 = vmatpush.msra.mxu0 %v880
  %902 = vmatmul.f32.gmra.mxu0 %v884
  %v903 = vpop.f32.mrf.mxu0
  %v904 = vadd.f32 0.0, %v903
  %905 = vdwg.mxu0
  %v906 = vadd.f32 %v852, %v904
  %v907 = vld [vmem:[%s11] sm:$0x1]
  %v909 = vperm.slane %v907, 0
  %v911 = vadd.f32 %v906, %v909
  %v912 = vmax.f32 %v911, 0.0
  %v913 = vld [vmem:[%s12] sm:$0x3]
  %vm914 = vcmask 15360
  %v916 = vsel %vm914, %v913, 0
  %vm918 = vcmask 1041408
  %v920 = vsel %vm918, %v912, 0
  %922 = vmatpush.msra.mxu0 0.0
  %923 = vmatpush.msra.mxu0 0.0
  %924 = vmatpush.msra.mxu0 0.0
  %925 = vmatpush.msra.mxu0 0.0
  %926 = vmatpush.msra.mxu0 0.0
  %927 = vmatpush.msra.mxu0 0.0
  %928 = vmatpush.msra.mxu0 0.0
  %929 = vmatpush.msra.mxu0 0.0
  %930 = vmatpush.msra.mxu0 0.0
  %931 = vmatpush.msra.mxu0 0.0
  %932 = vmatpush.msra.mxu0 0.0
  %933 = vmatpush.msra.mxu0 0.0
  %934 = vmatpush.msra.mxu0 0.0
  %935 = vmatpush.msra.mxu0 0.0
  %936 = vmatpush.msra.mxu0 0.0
  %937 = vmatpush.msra.mxu0 %v920
  %938 = vmatmul.f32.gmra.mxu0 %v916
  %v939 = vpop.f32.mrf.mxu0
  %v940 = vadd.f32 0.0, %v939
  %941 = vdwg.mxu0
  %v942 = vld [vmem:[%s13] sm:$0xff]
  %v943 = vld [vmem:[#allocation2] sm:$0x1]
  %v945 = vperm.slane %v943, 0
  %vm947 = vcmask 64512
  %v949 = vsel %vm947, %v940, 0
  %951 = vmatpush.msra.mxu0 0.0
  %952 = vmatpush.msra.mxu0 0.0
  %953 = vmatpush.msra.mxu0 0.0
  %954 = vmatpush.msra.mxu0 0.0
  %955 = vmatpush.msra.mxu0 0.0
  %956 = vmatpush.msra.mxu0 0.0
  %957 = vmatpush.msra.mxu0 0.0
  %958 = vmatpush.msra.mxu0 0.0
  %959 = vmatpush.msra.mxu0 0.0
  %960 = vmatpush.msra.mxu0 0.0
  %961 = vmatpush.msra.mxu0 0.0
  %962 = vmatpush.msra.mxu0 0.0
  %963 = vmatpush.msra.mxu0 0.0
  %964 = vmatpush.msra.mxu0 0.0
  %965 = vmatpush.msra.mxu0 0.0
  %966 = vmatpush.msra.mxu0 %v942
  %967 = vmatmul.f32.gmra.mxu0 %v949
  %v968 = vpop.f32.mrf.mxu0
  %v969 = vadd.f32 %v945, %v968
  %970 = vdwg.mxu0
  %vm971 = vcmask 1024
  %972 = vst.msk [vmem:[%s15] sm:$0x3] %vm971, %v969
  // Predicated region
  $region62: #{simple_cnn_forward.1} parent=0 // pred_check
    _
  $region63: #{simple_cnn_forward.1} parent=0 // pred_check_branch
    %974 = sbr.rel (0) target = $region65
  $region64: #{simple_cnn_forward.1} parent=0 // pred_region
    _
  $region65: #{simple_cnn_forward.1} parent=0 // pred_fallthru
    _
  // Predicated region
  $region66: #{simple_cnn_forward.1} parent=0 // pred_check
    _
  $region67: #{simple_cnn_forward.1} parent=0 // pred_check_branch
    %976 = sbr.rel (0) target = $region69
  $region68: #{simple_cnn_forward.1} parent=0 // pred_region
    _
  $region69: #{simple_cnn_forward.1} parent=0 // pred_fallthru
    _

</llo_original>
